<compile_context>
chip_gen: v7x
topology: tpu7x:2x2x1
jax: 0.10.0
libtpu: 0.0.40
codegen_flags: <defaults>
</compile_context>

<pallas_src>
import functools
import math

import jax
import jax.numpy as jnp
from jax.experimental import pallas as pl
from jax.experimental.pallas import tpu as pltpu

EMBED_DIM = 32          # embed_dim
N_HEAD = 4              # n_head
MODEL_EMBED_DIM = 48    # model_embed_dim (kdim == vdim)
HEAD_DIM = EMBED_DIM // N_HEAD
LN_EPS = 1e-5


def _cross_attn_kernel(x_ref, wkv_ref, bkv_ref, wo_ref, p3_ref, ln_out_ref,
                       *, seq_len, approx_recip):
    """One batch tile.

    x_ref:      (tb*S, Dm)  input tile (pre-flattened in the wrapper)
    wkv_ref:    (Dm, 2E)    [folded+scaled K (lane-replicated per head) | V]
    bkv_ref:    (1, 2E)     fused biases (f32)
    wo_ref:     (E, E)      output projection
    p3_ref:     (3, E)      packed bo / gamma / beta (f32)
    ln_out_ref: (tb, E)     LayerNorm(attn_out) slab
    """
    tbs, _ = x_ref.shape
    e = ln_out_ref.shape[-1]
    s = seq_len
    tb = tbs // s

    # One fused MXU matmul, f32 accumulation. Columns [0:E) are the folded-K
    # per-head scores (already scaled by 1/sqrt(head_dim) and replicated across
    # each head's HEAD_DIM lanes); columns [E:2E) are the V projection.
    kv = jnp.dot(x_ref[...], wkv_ref[...], preferred_element_type=jnp.float32)
    kv = kv + bkv_ref[...]                                # (tb*S, 2E), f32
    kv3 = kv.reshape(tb, s, 2 * e)                        # S==8 -> sublane split, no relayout
    scores = kv3[:, :, :e]
    v = kv3[:, :, e:]

    # Softmax over the key axis S, all heads / all batch rows at once (f32).
    m = jnp.max(scores, axis=1, keepdims=True)            # (tb, 1, E)
    ex = jnp.exp(scores - m)
    denom = jnp.sum(ex, axis=1, keepdims=True)
    p = ex * pl.reciprocal(denom, approx=approx_recip)
    attn = jnp.sum(p * v, axis=1)                         # (tb, E) == concat of head outputs

    p3 = p3_ref[...]                                      # (3, E): bo / gamma / beta
    bo, gamma, beta = p3[0:1, :], p3[1:2, :], p3[2:3, :]

    attn_out = jnp.dot(attn.astype(wo_ref.dtype), wo_ref[...],
                       preferred_element_type=jnp.float32) + bo

    # TODO(synk): nn.Dropout is identity here (eval-mode semantics; no RNG mask applied).
    # LayerNorm over embed_dim, in f32.
    mean = jnp.mean(attn_out, axis=-1, keepdims=True)
    var = jnp.mean((attn_out - mean) ** 2, axis=-1, keepdims=True)
    y = (attn_out - mean) * jax.lax.rsqrt(var + LN_EPS)
    ln_out_ref[...] = (y * gamma + beta).astype(ln_out_ref.dtype)


def _fold_params(params):
    """Hoist the batch-invariant query projection and fold it into K (all f32)."""
    E, Dm, H, hd = EMBED_DIM, MODEL_EMBED_DIM, N_HEAD, HEAD_DIM
    hp = jax.lax.Precision.HIGHEST
    scale = 1.0 / math.sqrt(hd)

    # q = query @ Wq^T + bq  (batch independent -> computed once here)
    q = (jnp.dot(params["query"], params["wq_t"], precision=hp)
         + params["bq"]).reshape(H, hd)                                      # (H, hd)

    # Fold q into K: scores_h(x) = x @ (Wk_h^T q_h) + q_h . bk_h, then * scale.
    wk_fold = jnp.einsum("dhk,hk->dh", params["wk_t"].reshape(Dm, H, hd), q,
                         precision=hp)                                       # (Dm, H)
    bk_fold = jnp.sum(params["bk"].reshape(H, hd) * q, axis=1)               # (H,)

    # Replicate each head's folded column across its HEAD_DIM lanes so the
    # kernel never repeats/concatenates across lanes.
    wk_rep = jnp.repeat(wk_fold * scale, hd, axis=1)                         # (Dm, E)
    bk_rep = jnp.repeat(bk_fold * scale, hd, axis=0)                         # (E,)

    w_fused = jnp.concatenate([wk_rep, params["wv_t"]], axis=1)              # (Dm, 2E)
    b_fused = jnp.concatenate([bk_rep, params["bv"][0]], axis=0)[None, :]    # (1, 2E)
    p3 = jnp.concatenate([params["bo"], params["gamma"], params["beta"]],
                         axis=0)                                             # (3, E)
    return w_fused, b_fused, p3


def _attn_single_row(x_row, w_fused, b_fused, wo_t, bo):
    """attn_out for one batch element, plain f32 JAX (tiny, batch-invariant cost)."""
    hp = jax.lax.Precision.HIGHEST
    E = EMBED_DIM
    kv = jnp.dot(x_row, w_fused, precision=hp) + b_fused                     # (S, 2E)
    scores, v = kv[:, :E], kv[:, E:]
    p = jax.nn.softmax(scores, axis=0)
    attn = jnp.sum(p * v, axis=0, keepdims=True)                             # (1, E)
    return jnp.dot(attn, wo_t, precision=hp) + bo                            # (1, E)


@functools.partial(jax.jit, static_argnames=("block_b", "compute_dtype"))
def cross_attention_head(x, params, *, block_b=4096, compute_dtype=jnp.bfloat16):
    """Returns (layernorm(attn_out) of shape (B,1,E), attn_out[1] of shape (1,E))."""
    B, S, Dm = x.shape
    E = EMBED_DIM

    w_fused, b_fused, p3 = _fold_params(params)        # f32 masters
    wo_f32 = params["wo_t"]

    # bf16 data path halves the dominant HBM read (x / weights); math stays f32.
    x_flat = x.reshape(B * S, Dm).astype(compute_dtype)    # free XLA reshape
    wkv = w_fused.astype(compute_dtype)
    wo = wo_f32.astype(compute_dtype)
    b_fused_f32 = b_fused.astype(jnp.float32)
    p3_f32 = p3.astype(jnp.float32)

    # Batch tile: ~(2*S*Dm*itemsize + 2*128*4) bytes/row double-buffered, so the
    # default block_b=4096 is ~10 MiB (bf16) / ~16 MiB (f32) -- safely under the
    # 32 MiB scoped-VMEM default on v5e/v6e/v7x. Tune upward on v5e/v6e if desired.
    tb = min(block_b, B)
    if tb < B:
        tb = max(8, (tb // 8) * 8)       # keep (8,128) tiling constraint on the out block
    grid = (pl.cdiv(B, tb),)
    use_approx = jnp.dtype(compute_dtype) == jnp.dtype(jnp.bfloat16)

    itemsize = jnp.dtype(compute_dtype).itemsize
    cost = pl.CostEstimate(
        flops=2 * B * S * Dm * (2 * E) + 2 * B * E * E,
        transcendentals=B * S * E,
        bytes_accessed=(B * S * Dm * itemsize                # x read
                        + B * E * 4                          # ln_out write
                        + (Dm * 2 * E + E * E) * itemsize    # weights
                        + (2 * E + 3 * E) * 4),              # small params
    )

    grid_spec = pltpu.PrefetchScalarGridSpec(
        num_scalar_prefetch=0,
        grid=grid,
        in_specs=[
            pl.BlockSpec((tb * S, Dm), lambda b: (b, 0)),    # x tile (tb batch rows, flattened)
            pl.BlockSpec((Dm, 2 * E), lambda b: (0, 0)),     # fused [folded-K | V] weights
            pl.BlockSpec((1, 2 * E), lambda b: (0, 0)),      # fused biases
            pl.BlockSpec((E, E), lambda b: (0, 0)),          # Wo^T
            pl.BlockSpec((3, E), lambda b: (0, 0)),          # packed bo / gamma / beta
        ],
        out_specs=pl.BlockSpec((tb, E), lambda b: (b, 0)),   # LayerNorm output slab
    )

    ln_out = pl.pallas_call(
        functools.partial(_cross_attn_kernel, seq_len=S,
                          approx_recip=bool(use_approx)),
        out_shape=jax.ShapeDtypeStruct((B, E), jnp.float32),
        grid_spec=grid_spec,
        cost_estimate=cost,
        compiler_params=pltpu.CompilerParams(
            # On v7x the batch axis can be sharded across both TensorCores;
            # on v5e/v6e (1 TC) this is a no-op.
            dimension_semantics=("parallel",)),
    )(x_flat, wkv, b_fused_f32, wo, p3_f32)

    ln_out = ln_out.reshape(B, 1, E)

    # PyTorch returns (layernorm(dropout(attn)), attn[1]). attn[1] is a single
    # (1, E) row, so it is recomputed here in f32 instead of streaming the full
    # (B, E) attn_out from the kernel (halves the kernel's HBM write traffic).
    attn_1 = _attn_single_row(x[1].astype(jnp.float32), w_fused, b_fused,
                              wo_f32, params["bo"])
    return ln_out, attn_1


def _reference(x, p):
    """Pure-JAX reference of the PyTorch forward (eval mode), f32."""
    B, S, _ = x.shape
    hp = jax.lax.Precision.HIGHEST
    q = jnp.dot(p["query"], p["wq_t"], precision=hp) + p["bq"]               # (1, E)
    q = jnp.broadcast_to(q[None], (B, 1, EMBED_DIM))
    k = jnp.einsum("bsd,de->bse", x, p["wk_t"], precision=hp) + p["bk"]
    v = jnp.einsum("bsd,de->bse", x, p["wv_t"], precision=hp) + p["bv"]
    qh = q.reshape(B, 1, N_HEAD, HEAD_DIM)
    kh = k.reshape(B, S, N_HEAD, HEAD_DIM)
    vh = v.reshape(B, S, N_HEAD, HEAD_DIM)
    scores = jnp.einsum("bqhd,bkhd->bhqk", qh, kh, precision=hp) / math.sqrt(HEAD_DIM)
    attn = jax.nn.softmax(scores, axis=-1)
    out = jnp.einsum("bhqk,bkhd->bqhd", attn, vh, precision=hp).reshape(B, 1, EMBED_DIM)
    attn_out = jnp.einsum("bqe,ef->bqf", out, p["wo_t"], precision=hp) + p["bo"]
    mean = attn_out.mean(-1, keepdims=True)
    var = ((attn_out - mean) ** 2).mean(-1, keepdims=True)
    ln = (attn_out - mean) / jnp.sqrt(var + LN_EPS) * p["gamma"] + p["beta"]
    return ln, attn_out[1]


def _init_params(key):
    ks = jax.random.split(key, 10)
    E, Dm = EMBED_DIM, MODEL_EMBED_DIM
    return {
        # nn.Parameter(torch.randn(1, 1, embed_dim)) stored as (1, E)
        "query": jax.random.normal(ks[0], (1, E), jnp.float32),
        # projection weights stored pre-transposed (in_features, out_features)
        "wq_t": jax.random.normal(ks[1], (E, E), jnp.float32) * 0.1,
        "wk_t": jax.random.normal(ks[2], (Dm, E), jnp.float32) * 0.1,
        "wv_t": jax.random.normal(ks[3], (Dm, E), jnp.float32) * 0.1,
        "wo_t": jax.random.normal(ks[4], (E, E), jnp.float32) * 0.1,
        "bq": jax.random.normal(ks[5], (1, E), jnp.float32) * 0.01,
        "bk": jax.random.normal(ks[6], (1, E), jnp.float32) * 0.01,
        "bv": jax.random.normal(ks[7], (1, E), jnp.float32) * 0.01,
        "bo": jax.random.normal(ks[8], (1, E), jnp.float32) * 0.01,
        # LayerNorm default init: weight=1, bias=0
        "gamma": jnp.ones((1, E), jnp.float32),
        "beta": jnp.zeros((1, E), jnp.float32),
    }


if __name__ == "__main__":
    B, S = 8, 8
    key = jax.random.PRNGKey(0)
    kp, kx = jax.random.split(key)
    params = _init_params(kp)
    x = jax.random.normal(kx, (B, S, MODEL_EMBED_DIM), jnp.float32)

    ref_ln, ref_attn_1 = _reference(x, params)

    # Default bf16 data path (halves dominant HBM traffic; f32 accumulation/softmax/LN).
    ln_bf, attn_1_bf = jax.block_until_ready(cross_attention_head(x, params))
    assert ln_bf.shape == (B, 1, EMBED_DIM)
    assert attn_1_bf.shape == (1, EMBED_DIM)
    assert jnp.allclose(ln_bf, ref_ln, atol=1e-1, rtol=1e-1)
    assert jnp.allclose(attn_1_bf, ref_attn_1, atol=1e-4, rtol=1e-4)

    # f32 data path (tighter tolerance).
    ln_f32, attn_1_f32 = jax.block_until_ready(
        cross_attention_head(x, params, compute_dtype=jnp.float32))
    assert jnp.allclose(ln_f32, ref_ln, atol=1e-2, rtol=1e-2)
    assert jnp.allclose(attn_1_f32, ref_attn_1, atol=1e-4, rtol=1e-4)

    print("KERNEL_OK")
</pallas_src>

<mosaic_0001>
module attributes {stable_mosaic.version = 11 : i64} {
  func.func @_cross_attn_kernel(%arg0: i32, %arg1: memref<64x48xbf16, #tpu.memory_space<vmem>>, %arg2: memref<48x64xbf16, #tpu.memory_space<vmem>>, %arg3: memref<1x64xf32, #tpu.memory_space<vmem>>, %arg4: memref<32x32xbf16, #tpu.memory_space<vmem>>, %arg5: memref<3x32xf32, #tpu.memory_space<vmem>>, %arg6: memref<8x32xf32, #tpu.memory_space<vmem>>) attributes {dimension_semantics = [#tpu.dimension_semantics<parallel>], iteration_bounds = array<i64: 1>, scalar_prefetch = 0 : i64, scratch_operands = 0 : i64, tpu.core_type = #tpu.core_type<tc>, window_params = [{transform_indices = @transform_0, window_bounds = array<i64: 64, 48>}, {pipeline_mode = #tpu.pipeline_mode<synchronous>, transform_indices = @transform_1, window_bounds = array<i64: 48, 64>}, {pipeline_mode = #tpu.pipeline_mode<synchronous>, transform_indices = @transform_2, window_bounds = array<i64: 1, 64>}, {pipeline_mode = #tpu.pipeline_mode<synchronous>, transform_indices = @transform_3, window_bounds = array<i64: 32, 32>}, {pipeline_mode = #tpu.pipeline_mode<synchronous>, transform_indices = @transform_4, window_bounds = array<i64: 3, 32>}, {transform_indices = @transform_5, window_bounds = array<i64: 8, 32>}]} {
    %c0 = arith.constant 0 : index
    %c0_0 = arith.constant 0 : index
    %0 = vector.load %arg1[%c0, %c0_0] : memref<64x48xbf16, #tpu.memory_space<vmem>>, vector<64x48xbf16>
    %c0_1 = arith.constant 0 : index
    %c0_2 = arith.constant 0 : index
    %1 = vector.load %arg2[%c0_1, %c0_2] : memref<48x64xbf16, #tpu.memory_space<vmem>>, vector<48x64xbf16>
    %cst = arith.constant dense<0.000000e+00> : vector<64x64xf32>
    %2 = tpu.matmul %0, %1, %cst {dimension_numbers = #tpu.dot_dimension_numbers<[1], [0], [0], [1], [0, 0, 1, 1], [], []>} : vector<64x48xbf16>, vector<48x64xbf16>, vector<64x64xf32> -> vector<64x64xf32>
    %c0_3 = arith.constant 0 : index
    %c0_4 = arith.constant 0 : index
    %3 = vector.load %arg3[%c0_3, %c0_4] : memref<1x64xf32, #tpu.memory_space<vmem>>, vector<1x64xf32>
    %4 = vector.broadcast %3 : vector<1x64xf32> to vector<64x64xf32>
    %5 = arith.addf %2, %4 : vector<64x64xf32>
    %6 = vector.shape_cast %5 : vector<64x64xf32> to vector<8x8x64xf32>
    %7 = vector.extract_strided_slice %6 {offsets = [0, 0, 0], sizes = [8, 8, 32], strides = [1, 1, 1]} : vector<8x8x64xf32> to vector<8x8x32xf32>
    %8 = vector.extract_strided_slice %6 {offsets = [0, 0, 32], sizes = [8, 8, 32], strides = [1, 1, 1]} : vector<8x8x64xf32> to vector<8x8x32xf32>
    %cst_5 = arith.constant dense<0xFF800000> : vector<8x32xf32>
    %9 = vector.multi_reduction <maximumf>, %7, %cst_5 [1] : vector<8x8x32xf32> to vector<8x32xf32>
    %10 = vector.shape_cast %9 : vector<8x32xf32> to vector<8x1x32xf32>
    %11 = vector.broadcast %10 : vector<8x1x32xf32> to vector<8x8x32xf32>
    %12 = arith.subf %7, %11 : vector<8x8x32xf32>
    %13 = math.exp %12 : vector<8x8x32xf32>
    %cst_6 = arith.constant dense<0.000000e+00> : vector<8x32xf32>
    %14 = vector.multi_reduction <add>, %13, %cst_6 [1] : vector<8x8x32xf32> to vector<8x32xf32>
    %15 = vector.shape_cast %14 : vector<8x32xf32> to vector<8x1x32xf32>
    %16 = tpu.reciprocal %15 {approx = true} : vector<8x1x32xf32> -> vector<8x1x32xf32>
    %17 = vector.broadcast %16 : vector<8x1x32xf32> to vector<8x8x32xf32>
    %18 = arith.mulf %13, %17 : vector<8x8x32xf32>
    %19 = arith.mulf %18, %8 : vector<8x8x32xf32>
    %cst_7 = arith.constant dense<0.000000e+00> : vector<8x32xf32>
    %20 = vector.multi_reduction <add>, %19, %cst_7 [1] : vector<8x8x32xf32> to vector<8x32xf32>
    %c0_8 = arith.constant 0 : index
    %c0_9 = arith.constant 0 : index
    %21 = vector.load %arg5[%c0_8, %c0_9] : memref<3x32xf32, #tpu.memory_space<vmem>>, vector<3x32xf32>
    %22 = vector.extract_strided_slice %21 {offsets = [0, 0], sizes = [1, 32], strides = [1, 1]} : vector<3x32xf32> to vector<1x32xf32>
    %23 = vector.extract_strided_slice %21 {offsets = [1, 0], sizes = [1, 32], strides = [1, 1]} : vector<3x32xf32> to vector<1x32xf32>
    %24 = vector.extract_strided_slice %21 {offsets = [2, 0], sizes = [1, 32], strides = [1, 1]} : vector<3x32xf32> to vector<1x32xf32>
    %25 = arith.truncf %20 : vector<8x32xf32> to vector<8x32xbf16>
    %c0_10 = arith.constant 0 : index
    %c0_11 = arith.constant 0 : index
    %26 = vector.load %arg4[%c0_10, %c0_11] : memref<32x32xbf16, #tpu.memory_space<vmem>>, vector<32x32xbf16>
    %cst_12 = arith.constant dense<0.000000e+00> : vector<8x32xf32>
    %27 = tpu.matmul %25, %26, %cst_12 {dimension_numbers = #tpu.dot_dimension_numbers<[1], [0], [0], [1], [0, 0, 1, 1], [], []>} : vector<8x32xbf16>, vector<32x32xbf16>, vector<8x32xf32> -> vector<8x32xf32>
    %28 = vector.broadcast %22 : vector<1x32xf32> to vector<8x32xf32>
    %29 = arith.addf %27, %28 : vector<8x32xf32>
    %cst_13 = arith.constant dense<0.000000e+00> : vector<8xf32>
    %30 = vector.multi_reduction <add>, %29, %cst_13 [1] : vector<8x32xf32> to vector<8xf32>
    %31 = vector.shape_cast %30 : vector<8xf32> to vector<8x1xf32>
    %cst_14 = arith.constant 3.200000e+01 : f32
    %32 = vector.broadcast %cst_14 : f32 to vector<8x1xf32>
    %33 = arith.divf %31, %32 : vector<8x1xf32>
    %34 = vector.broadcast %33 : vector<8x1xf32> to vector<8x32xf32>
    %35 = arith.subf %29, %34 : vector<8x32xf32>
    %36 = arith.mulf %35, %35 : vector<8x32xf32>
    %cst_15 = arith.constant dense<0.000000e+00> : vector<8xf32>
    %37 = vector.multi_reduction <add>, %36, %cst_15 [1] : vector<8x32xf32> to vector<8xf32>
    %38 = vector.shape_cast %37 : vector<8xf32> to vector<8x1xf32>
    %cst_16 = arith.constant 3.200000e+01 : f32
    %39 = vector.broadcast %cst_16 : f32 to vector<8x1xf32>
    %40 = arith.divf %38, %39 : vector<8x1xf32>
    %41 = vector.broadcast %33 : vector<8x1xf32> to vector<8x32xf32>
    %42 = arith.subf %29, %41 : vector<8x32xf32>
    %cst_17 = arith.constant 9.99999974E-6 : f32
    %43 = vector.broadcast %cst_17 : f32 to vector<8x1xf32>
    %44 = arith.addf %40, %43 : vector<8x1xf32>
    %45 = math.rsqrt %44 : vector<8x1xf32>
    %46 = vector.broadcast %45 : vector<8x1xf32> to vector<8x32xf32>
    %47 = arith.mulf %42, %46 : vector<8x32xf32>
    %48 = vector.broadcast %23 : vector<1x32xf32> to vector<8x32xf32>
    %49 = arith.mulf %47, %48 : vector<8x32xf32>
    %50 = vector.broadcast %24 : vector<1x32xf32> to vector<8x32xf32>
    %51 = arith.addf %49, %50 : vector<8x32xf32>
    %c0_18 = arith.constant 0 : index
    %c0_19 = arith.constant 0 : index
    %52 = vector.load %arg6[%c0_18, %c0_19] : memref<8x32xf32, #tpu.memory_space<vmem>>, vector<8x32xf32>
    tpu.vector_store %arg6[%c0_18, %c0_19], %51 {strides = array<i32>} : memref<8x32xf32, #tpu.memory_space<vmem>>, vector<8x32xf32>,
    return
  }
  func.func @transform_0(%arg0: i32) -> (i32, i32) {
    %c0_i32 = arith.constant 0 : i32
    %c0_i32_0 = arith.constant 0 : i32
    return %arg0, %c0_i32 : i32, i32
  }
  func.func @transform_1(%arg0: i32) -> (i32, i32) {
    %c0_i32 = arith.constant 0 : i32
    %c0_i32_0 = arith.constant 0 : i32
    %c0_i32_1 = arith.constant 0 : i32
    return %c0_i32, %c0_i32_0 : i32, i32
  }
  func.func @transform_2(%arg0: i32) -> (i32, i32) {
    %c0_i32 = arith.constant 0 : i32
    %c0_i32_0 = arith.constant 0 : i32
    %c0_i32_1 = arith.constant 0 : i32
    return %c0_i32, %c0_i32_0 : i32, i32
  }
  func.func @transform_3(%arg0: i32) -> (i32, i32) {
    %c0_i32 = arith.constant 0 : i32
    %c0_i32_0 = arith.constant 0 : i32
    %c0_i32_1 = arith.constant 0 : i32
    return %c0_i32, %c0_i32_0 : i32, i32
  }
  func.func @transform_4(%arg0: i32) -> (i32, i32) {
    %c0_i32 = arith.constant 0 : i32
    %c0_i32_0 = arith.constant 0 : i32
    %c0_i32_1 = arith.constant 0 : i32
    return %c0_i32, %c0_i32_0 : i32, i32
  }
  func.func @transform_5(%arg0: i32) -> (i32, i32) {
    %c0_i32 = arith.constant 0 : i32
    %c0_i32_0 = arith.constant 0 : i32
    return %arg0, %c0_i32 : i32, i32
  }
}

</mosaic_0001>

<llo_original>
// kernel: cross_attention_head.1
$region0: #{cross_attention_head.1}
  #allocation0 [shape = 'u32[]', space=smem, size = 0x4, offset = 0x4, fixed_abs, tag = 'smem constant byte address 0x4 - core index']
  #allocation1 [shape = 'u32[144,128]{1,0:T(1,128)}', space=vmem, size = 0x12000, scoped, tag = 'internal scratch']
  %s0 = inlined_call_operand.vmem [shape: bf16[64,48], index: 0, kind: input, shape index: {}]
  %s1 = inlined_call_operand.vmem [shape: bf16[48,64], index: 1, kind: input, shape index: {}]
  %s2 = inlined_call_operand.vmem [shape: f32[1,64], index: 2, kind: input, shape index: {}]
  %s3 = inlined_call_operand.vmem [shape: bf16[32,32], index: 3, kind: input, shape index: {}]
  %s4 = inlined_call_operand.vmem [shape: f32[3,32], index: 4, kind: input, shape index: {}]
  %s5 = inlined_call_operand.hbm [shape: f32[8,32], index: 5, kind: output, shape index: {}]
  %s6 = sld [smem:[#allocation0]]
  $region30: #{cross_attention_head.1} parent=0
    _
  %s8 = ssub.s32 1, %s6
  %s9 = scalar_select 0, %s8, %s6
  $region1: #{cross_attention_head.1} parent=0
    #allocation2 [shape = 'u8[4096]{0}', space=vmem, size = 0x1000, scoped, tag = 'output window, operand 0, single buffered']
    #allocation3 [shape = 's32[1]{0}', space=sflag, size = 0x4, scoped, tag = 'scoped memory for cross_attention_head.1']
    %10 = vsyncpa [#allocation3], 0
    // Predicated region
    $region2: #{cross_attention_head.1} parent=1 // pred_check
      _
    $region3: #{cross_attention_head.1} parent=1 // pred_check_branch
      %12 = sbr.rel (0) target = $region5
    $region4: #{cross_attention_head.1} parent=1 // pred_region
      _
    $region5: #{cross_attention_head.1} parent=1 // pred_fallthru
      _
    // Predicated region
    $region6: #{cross_attention_head.1} parent=1 // pred_check
      _
    $region7: #{cross_attention_head.1} parent=1 // pred_check_branch
      %14 = sbr.rel (0) target = $region9
    $region8: #{cross_attention_head.1} parent=1 // pred_region
      _
    $region9: #{cross_attention_head.1} parent=1 // pred_fallthru
      _
    // Predicated region
    $region10: #{cross_attention_head.1} parent=1 // pred_check
      _
    $region11: #{cross_attention_head.1} parent=1 // pred_check_branch
      %16 = sbr.rel (0) target = $region13
    $region12: #{cross_attention_head.1} parent=1 // pred_region
      _
    $region13: #{cross_attention_head.1} parent=1 // pred_fallthru
      _
    // Predicated region
    $region14: #{cross_attention_head.1} parent=1 // pred_check
      _
    $region15: #{cross_attention_head.1} parent=1 // pred_check_branch
      %18 = sbr.rel (0) target = $region17
    $region16: #{cross_attention_head.1} parent=1 // pred_region
      _
    $region17: #{cross_attention_head.1} parent=1 // pred_fallthru
      _
    // Predicated region
    $region18: #{cross_attention_head.1} parent=1 // pred_check
      _
    $region19: #{cross_attention_head.1} parent=1 // pred_check_branch
      %20 = sbr.rel (0) target = $region21
    $region20: #{cross_attention_head.1} parent=1 // pred_region
      _
    $region21: #{cross_attention_head.1} parent=1 // pred_fallthru
      _
    %v22 = vld [vmem:[%s0] sm:$0xf]
    %v23 = vld [vmem:[%s0 + $0x4] sm:$0xf]
    %v24 = vld [vmem:[%s0 + $0x8] sm:$0xf]
    %v25 = vld [vmem:[%s0 + $0xc] sm:$0xf]
    %v26 = vld [vmem:[%s0 + $0x10] sm:$0xf]
    %v27 = vld [vmem:[%s0 + $0x14] sm:$0xf]
    %v28 = vld [vmem:[%s0 + $0x18] sm:$0xf]
    %v29 = vld [vmem:[%s0 + $0x1c] sm:$0xf]
    %v30 = vld [vmem:[%s1] sm:$0xf]
    %v31 = vld [vmem:[%s1 + $0x4] sm:$0xf]
    %v32 = vld [vmem:[%s1 + $0x8] sm:$0xf]
    %v33 = vld [vmem:[%s1 + $0xc] sm:$0xf]
    %v34 = vld [vmem:[%s1 + $0x10] sm:$0xf]
    %v35 = vld [vmem:[%s1 + $0x14] sm:$0xf]
    %v36 = vld [vmem:[%s2] sm:$0x1]
    %v38 = vlaneseq
    %v39 = vshrl.u32 %v38, 7
    %v40 = vsub.s32 0, %v39
    %v41 = vrot.slane %v36, %v40
    %v51 = vunpack.c.l.b16 %v22
    %v52 = vunpack.c.l.b16 %v23
    %v53 = vunpack.c.l.b16 %v24
    %v54 = vunpack.c.l.b16 %v25
    %v55 = vunpack.c.l.b16 %v26
    %v56 = vunpack.c.l.b16 %v27
    %v57 = vunpack.c.l.b16 %v28
    %v58 = vunpack.c.l.b16 %v29
    %v59 = vpack.c.b16 %v52, %v51
    %v60 = vpack.c.b16 %v54, %v53
    %v61 = vpack.c.b16 %v56, %v55
    %v62 = vpack.c.b16 %v58, %v57
    %v69 = vunpack.c.l.b16 %v30
    %v70 = vunpack.c.l.b16 %v31
    %v71 = vunpack.c.l.b16 %v32
    %v72 = vunpack.c.l.b16 %v33
    %v73 = vunpack.c.l.b16 %v34
    %v74 = vunpack.c.l.b16 %v35
    %v75 = vpack.c.b16 %v70, %v69
    %v76 = vpack.c.b16 %v72, %v71
    %v77 = vpack.c.b16 %v74, %v73
    %vm81 = vcmask 392192
    %v83 = vsel %vm81, %v59, 0
    %v86 = vsel %vm81, %v60, 0
    %v89 = vsel %vm81, %v61, 0
    %v92 = vsel %vm81, %v62, 0
    %94 = vmatprep.subr.bf16.mxu0 0
    %95 = vmatpush1.bf16.msra.mxu0 %v75
    %96 = vmatprep.subr.bf16.mxu0 0
    %97 = vmatpush1.bf16.msra.mxu0 %v76
    %98 = vmatprep.subr.bf16.mxu0 0
    %99 = vmatpush1.bf16.msra.mxu0 %v77
    %100 = vmatprep.subr.bf16.mxu0 0
    %101 = vmatpush1.bf16.msra.mxu0 0
    %102 = vmatprep.subr.bf16.mxu0 0
    %103 = vmatpush1.bf16.msra.mxu0 0
    %104 = vmatprep.subr.bf16.mxu0 0
    %105 = vmatpush1.bf16.msra.mxu0 0
    %106 = vmatprep.subr.bf16.mxu0 0
    %107 = vmatpush1.bf16.msra.mxu0 0
    %108 = vmatprep.subr.bf16.mxu0 0
    %109 = vmatpush1.bf16.msra.mxu0 0
    %110 = vmatprep.subr.bf16.mxu0 0
    %111 = vmatpush1.bf16.msra.mxu0 0
    %112 = vmatprep.subr.bf16.mxu0 0
    %113 = vmatpush1.bf16.msra.mxu0 0
    %114 = vmatprep.subr.bf16.mxu0 0
    %115 = vmatpush1.bf16.msra.mxu0 0
    %116 = vmatprep.subr.bf16.mxu0 0
    %117 = vmatpush1.bf16.msra.mxu0 0
    %118 = vmatprep.subr.bf16.mxu0 0
    %119 = vmatpush1.bf16.msra.mxu0 0
    %120 = vmatprep.subr.bf16.mxu0 0
    %121 = vmatpush1.bf16.msra.mxu0 0
    %122 = vmatprep.subr.bf16.mxu0 0
    %123 = vmatpush1.bf16.msra.mxu0 0
    %124 = vmatprep.subr.bf16.mxu0 0
    %125 = vmatpush1.bf16.msra.mxu0 0
    %126 = vmatprep.mubr.bf16.mxu0 0
    %127 = vmatmul.mubr.bf16.gmra.mrb[0].mxu0 %v83
    %v128 = vpop.f32.mrb[0].mxu0
    %v129 = vadd.f32 %v41, %v128
    %v130 = vpop.f32.mrb[0].mxu0
    %v131 = vpop.f32.mrb[0].mxu0
    %v132 = vadd.f32 %v41, %v131
    %v133 = vpop.f32.mrb[0].mxu0
    %134 = vmatprep.mubr.bf16.mxu0 0
    %135 = vmatmul.mubr.bf16.gmra.mrb[0].mxu0 %v86
    %v136 = vpop.f32.mrb[0].mxu0
    %v137 = vadd.f32 %v41, %v136
    %v138 = vpop.f32.mrb[0].mxu0
    %v139 = vpop.f32.mrb[0].mxu0
    %v140 = vadd.f32 %v41, %v139
    %v141 = vpop.f32.mrb[0].mxu0
    %142 = vmatprep.mubr.bf16.mxu0 0
    %143 = vmatmul.mubr.bf16.gmra.mrb[0].mxu0 %v89
    %v144 = vpop.f32.mrb[0].mxu0
    %v145 = vadd.f32 %v41, %v144
    %v146 = vpop.f32.mrb[0].mxu0
    %v147 = vpop.f32.mrb[0].mxu0
    %v148 = vadd.f32 %v41, %v147
    %v149 = vpop.f32.mrb[0].mxu0
    %150 = vmatprep.mubr.bf16.mxu0 0
    %151 = vmatmul.mubr.bf16.gmra.mrb[0].mxu0 %v92
    %v152 = vpop.f32.mrb[0].mxu0
    %v153 = vadd.f32 %v41, %v152
    %v154 = vpop.f32.mrb[0].mxu0
    %v155 = vpop.f32.mrb[0].mxu0
    %v156 = vadd.f32 %v41, %v155
    %v157 = vpop.f32.mrb[0].mxu0
    %158 = vdwg.mxu0
    %vm159 = vcmask 261120
    %v160 = vsel %vm159, %v129, -inf
    %v161 = vrot.slane %v160, 4
    %v162 = vmax.f32 %v160, %v161
    %v163 = vrot.slane %v162, 2
    %v164 = vmax.f32 %v162, %v163
    %v165 = vrot.slane %v164, 1
    %v166 = vmax.f32 %v164, %v165
    %v167 = vsel %vm159, %v132, -inf
    %v168 = vrot.slane %v167, 4
    %v169 = vmax.f32 %v167, %v168
    %v170 = vrot.slane %v169, 2
    %v171 = vmax.f32 %v169, %v170
    %v172 = vrot.slane %v171, 1
    %v173 = vmax.f32 %v171, %v172
    %v174 = vsel %vm159, %v137, -inf
    %v175 = vrot.slane %v174, 4
    %v176 = vmax.f32 %v174, %v175
    %v177 = vrot.slane %v176, 2
    %v178 = vmax.f32 %v176, %v177
    %v179 = vrot.slane %v178, 1
    %v180 = vmax.f32 %v178, %v179
    %v181 = vsel %vm159, %v140, -inf
    %v182 = vrot.slane %v181, 4
    %v183 = vmax.f32 %v181, %v182
    %v184 = vrot.slane %v183, 2
    %v185 = vmax.f32 %v183, %v184
    %v186 = vrot.slane %v185, 1
    %v187 = vmax.f32 %v185, %v186
    %v188 = vsel %vm159, %v145, -inf
    %v189 = vrot.slane %v188, 4
    %v190 = vmax.f32 %v188, %v189
    %v191 = vrot.slane %v190, 2
    %v192 = vmax.f32 %v190, %v191
    %v193 = vrot.slane %v192, 1
    %v194 = vmax.f32 %v192, %v193
    %v195 = vsel %vm159, %v148, -inf
    %v196 = vrot.slane %v195, 4
    %v197 = vmax.f32 %v195, %v196
    %v198 = vrot.slane %v197, 2
    %v199 = vmax.f32 %v197, %v198
    %v200 = vrot.slane %v199, 1
    %v201 = vmax.f32 %v199, %v200
    %v202 = vsel %vm159, %v153, -inf
    %v203 = vrot.slane %v202, 4
    %v204 = vmax.f32 %v202, %v203
    %v205 = vrot.slane %v204, 2
    %v206 = vmax.f32 %v204, %v205
    %v207 = vrot.slane %v206, 1
    %v208 = vmax.f32 %v206, %v207
    %v209 = vsel %vm159, %v156, -inf
    %v210 = vrot.slane %v209, 4
    %v211 = vmax.f32 %v209, %v210
    %v212 = vrot.slane %v211, 2
    %v213 = vmax.f32 %v211, %v212
    %v214 = vrot.slane %v213, 1
    %v215 = vmax.f32 %v213, %v214
    %v216 = vsub.f32 %v129, %v166
    %v217 = vsub.f32 %v132, %v173
    %v218 = vsub.f32 %v137, %v180
    %v219 = vsub.f32 %v140, %v187
    %v220 = vsub.f32 %v145, %v194
    %v221 = vsub.f32 %v148, %v201
    %v222 = vsub.f32 %v153, %v208
    %v223 = vsub.f32 %v156, %v215
    %v224 = vmul.f32 %v216, 1.442695
    %v225 = vpow.pop %v224
    %v226 = vmul.f32 %v217, 1.442695
    %v227 = vpow.pop %v226
    %v228 = vmul.f32 %v218, 1.442695
    %v229 = vpow.pop %v228
    %v230 = vmul.f32 %v219, 1.442695
    %v231 = vpow.pop %v230
    %v232 = vmul.f32 %v220, 1.442695
    %v233 = vpow.pop %v232
    %v234 = vmul.f32 %v221, 1.442695
    %v235 = vpow.pop %v234
    %v236 = vmul.f32 %v222, 1.442695
    %v237 = vpow.pop %v236
    %v238 = vmul.f32 %v223, 1.442695
    %v239 = vpow.pop %v238
    %v240 = vsel %vm159, %v225, 0.0
    %v241 = vrot.slane %v240, 4
    %v242 = vadd.f32 %v240, %v241
    %v243 = vrot.slane %v242, 2
    %v244 = vadd.f32 %v242, %v243
    %v245 = vrot.slane %v244, 1
    %v246 = vadd.f32 %v244, %v245
    %v247 = vsel %vm159, %v227, 0.0
    %v248 = vrot.slane %v247, 4
    %v249 = vadd.f32 %v247, %v248
    %v250 = vrot.slane %v249, 2
    %v251 = vadd.f32 %v249, %v250
    %v252 = vrot.slane %v251, 1
    %v253 = vadd.f32 %v251, %v252
    %v254 = vsel %vm159, %v229, 0.0
    %v255 = vrot.slane %v254, 4
    %v256 = vadd.f32 %v254, %v255
    %v257 = vrot.slane %v256, 2
    %v258 = vadd.f32 %v256, %v257
    %v259 = vrot.slane %v258, 1
    %v260 = vadd.f32 %v258, %v259
    %v261 = vsel %vm159, %v231, 0.0
    %v262 = vrot.slane %v261, 4
    %v263 = vadd.f32 %v261, %v262
    %v264 = vrot.slane %v263, 2
    %v265 = vadd.f32 %v263, %v264
    %v266 = vrot.slane %v265, 1
    %v267 = vadd.f32 %v265, %v266
    %v268 = vsel %vm159, %v233, 0.0
    %v269 = vrot.slane %v268, 4
    %v270 = vadd.f32 %v268, %v269
    %v271 = vrot.slane %v270, 2
    %v272 = vadd.f32 %v270, %v271
    %v273 = vrot.slane %v272, 1
    %v274 = vadd.f32 %v272, %v273
    %v275 = vsel %vm159, %v235, 0.0
    %v276 = vrot.slane %v275, 4
    %v277 = vadd.f32 %v275, %v276
    %v278 = vrot.slane %v277, 2
    %v279 = vadd.f32 %v277, %v278
    %v280 = vrot.slane %v279, 1
    %v281 = vadd.f32 %v279, %v280
    %v282 = vsel %vm159, %v237, 0.0
    %v283 = vrot.slane %v282, 4
    %v284 = vadd.f32 %v282, %v283
    %v285 = vrot.slane %v284, 2
    %v286 = vadd.f32 %v284, %v285
    %v287 = vrot.slane %v286, 1
    %v288 = vadd.f32 %v286, %v287
    %v289 = vsel %vm159, %v239, 0.0
    %v290 = vrot.slane %v289, 4
    %v291 = vadd.f32 %v289, %v290
    %v292 = vrot.slane %v291, 2
    %v293 = vadd.f32 %v291, %v292
    %v294 = vrot.slane %v293, 1
    %v295 = vadd.f32 %v293, %v294
    %v296 = vrcp.pop %v246
    %v297 = vrcp.pop %v253
    %v298 = vrcp.pop %v260
    %v299 = vrcp.pop %v267
    %v300 = vrcp.pop %v274
    %v301 = vrcp.pop %v281
    %v302 = vrcp.pop %v288
    %v303 = vrcp.pop %v295
    %v304 = vmul.f32 %v225, %v296
    %v305 = vmul.f32 %v227, %v297
    %v306 = vmul.f32 %v229, %v298
    %v307 = vmul.f32 %v231, %v299
    %v308 = vmul.f32 %v233, %v300
    %v309 = vmul.f32 %v235, %v301
    %v310 = vmul.f32 %v237, %v302
    %v311 = vmul.f32 %v239, %v303
    %320 = vrot.lane.b32.xlu0 %v129, 96
    %v321 = vpop.permute.xlu0 %320
    %322 = vrot.lane.b32.xlu0 %v132, 96
    %v323 = vpop.permute.xlu0 %322
    %324 = vrot.lane.b32.xlu0 %v137, 96
    %v325 = vpop.permute.xlu0 %324
    %326 = vrot.lane.b32.xlu0 %v140, 96
    %v327 = vpop.permute.xlu0 %326
    %328 = vrot.lane.b32.xlu0 %v145, 96
    %v329 = vpop.permute.xlu0 %328
    %330 = vrot.lane.b32.xlu0 %v148, 96
    %v331 = vpop.permute.xlu0 %330
    %332 = vrot.lane.b32.xlu0 %v153, 96
    %v333 = vpop.permute.xlu0 %332
    %334 = vrot.lane.b32.xlu0 %v156, 96
    %v335 = vpop.permute.xlu0 %334
    %v344 = vmul.f32 %v304, %v321
    %v345 = vmul.f32 %v305, %v323
    %v346 = vmul.f32 %v306, %v325
    %v347 = vmul.f32 %v307, %v327
    %v348 = vmul.f32 %v308, %v329
    %v349 = vmul.f32 %v309, %v331
    %v350 = vmul.f32 %v310, %v333
    %v351 = vmul.f32 %v311, %v335
    %v352 = vsel %vm159, %v344, 0.0
    %v353 = vrot.slane %v352, 4
    %v354 = vadd.f32 %v352, %v353
    %v355 = vrot.slane %v354, 2
    %v356 = vadd.f32 %v354, %v355
    %v357 = vrot.slane %v356, 1
    %v358 = vadd.f32 %v356, %v357
    %v359 = vsel %vm159, %v345, 0.0
    %v360 = vrot.slane %v359, 4
    %v361 = vadd.f32 %v359, %v360
    %v362 = vrot.slane %v361, 2
    %v363 = vadd.f32 %v361, %v362
    %v364 = vrot.slane %v363, 1
    %v365 = vadd.f32 %v363, %v364
    %v366 = vsel %vm159, %v346, 0.0
    %v367 = vrot.slane %v366, 4
    %v368 = vadd.f32 %v366, %v367
    %v369 = vrot.slane %v368, 2
    %v370 = vadd.f32 %v368, %v369
    %v371 = vrot.slane %v370, 1
    %v372 = vadd.f32 %v370, %v371
    %v373 = vsel %vm159, %v347, 0.0
    %v374 = vrot.slane %v373, 4
    %v375 = vadd.f32 %v373, %v374
    %v376 = vrot.slane %v375, 2
    %v377 = vadd.f32 %v375, %v376
    %v378 = vrot.slane %v377, 1
    %v379 = vadd.f32 %v377, %v378
    %v380 = vsel %vm159, %v348, 0.0
    %v381 = vrot.slane %v380, 4
    %v382 = vadd.f32 %v380, %v381
    %v383 = vrot.slane %v382, 2
    %v384 = vadd.f32 %v382, %v383
    %v385 = vrot.slane %v384, 1
    %v386 = vadd.f32 %v384, %v385
    %v387 = vsel %vm159, %v349, 0.0
    %v388 = vrot.slane %v387, 4
    %v389 = vadd.f32 %v387, %v388
    %v390 = vrot.slane %v389, 2
    %v391 = vadd.f32 %v389, %v390
    %v392 = vrot.slane %v391, 1
    %v393 = vadd.f32 %v391, %v392
    %v394 = vsel %vm159, %v350, 0.0
    %v395 = vrot.slane %v394, 4
    %v396 = vadd.f32 %v394, %v395
    %v397 = vrot.slane %v396, 2
    %v398 = vadd.f32 %v396, %v397
    %v399 = vrot.slane %v398, 1
    %v400 = vadd.f32 %v398, %v399
    %v401 = vsel %vm159, %v351, 0.0
    %v402 = vrot.slane %v401, 4
    %v403 = vadd.f32 %v401, %v402
    %v404 = vrot.slane %v403, 2
    %v405 = vadd.f32 %v403, %v404
    %v406 = vrot.slane %v405, 1
    %v407 = vadd.f32 %v405, %v406
    %v408 = vld [vmem:[%s4] sm:$0x7]
    %v409 = vpack.c.bf16 %v358, %v358
    %v410 = vpack.c.bf16 %v365, %v365
    %v411 = vpack.c.bf16 %v372, %v372
    %v412 = vpack.c.bf16 %v379, %v379
    %v413 = vpack.c.bf16 %v386, %v386
    %v414 = vpack.c.bf16 %v393, %v393
    %v415 = vpack.c.bf16 %v400, %v400
    %v416 = vpack.c.bf16 %v407, %v407
    %v417 = vld [vmem:[%s3] sm:$0xf]
    %v418 = vld [vmem:[%s3 + $0x4] sm:$0xf]
    %v419 = vld [vmem:[%s3 + $0x8] sm:$0xf]
    %v420 = vld [vmem:[%s3 + $0xc] sm:$0xf]
    %v421 = vlaneseq
    %v422 = vshrl.u32 %v421, 7
    %v423 = vsub.s32 0, %v422
    %v424 = vrot.slane %v408, %v423
    %v433 = vunpack.c.l.b16 %v409
    %v434 = vunpack.c.l.b16 %v410
    %v435 = vunpack.c.l.b16 %v411
    %v436 = vunpack.c.l.b16 %v412
    %v437 = vunpack.c.l.b16 %v413
    %v438 = vunpack.c.l.b16 %v414
    %v439 = vunpack.c.l.b16 %v415
    %v440 = vunpack.c.l.b16 %v416
    %vm441 = vcmask 1041409
    %v442 = vsel %vm441, %v434, %v433
    %vm443 = vcmask 1042434
    %v444 = vsel %vm443, %v435, %v442
    %vm445 = vcmask 1043459
    %v446 = vsel %vm445, %v436, %v444
    %vm447 = vcmask 1044484
    %v448 = vsel %vm447, %v437, %v446
    %vm449 = vcmask 1045509
    %v450 = vsel %vm449, %v438, %v448
    %vm451 = vcmask 1046534
    %v452 = vsel %vm451, %v439, %v450
    %vm453 = vcmask 1047559
    %v454 = vsel %vm453, %v440, %v452
    %v455 = vpack.c.b16 %v454, %v454
    %v460 = vunpack.c.l.b16 %v417
    %v461 = vunpack.c.l.b16 %v418
    %v462 = vunpack.c.l.b16 %v419
    %v463 = vunpack.c.l.b16 %v420
    %v464 = vpack.c.b16 %v461, %v460
    %v465 = vpack.c.b16 %v463, %v462
    %v469 = vsel %vm159, %v455, 0
    %471 = vmatprep.subr.bf16.mxu0 0
    %472 = vmatpush1.bf16.msra.mxu0 %v464
    %473 = vmatprep.subr.bf16.mxu0 0
    %474 = vmatpush1.bf16.msra.mxu0 %v465
    %475 = vmatprep.subr.bf16.mxu0 0
    %476 = vmatpush1.bf16.msra.mxu0 0
    %477 = vmatprep.subr.bf16.mxu0 0
    %478 = vmatpush1.bf16.msra.mxu0 0
    %479 = vmatprep.subr.bf16.mxu0 0
    %480 = vmatpush1.bf16.msra.mxu0 0
    %481 = vmatprep.subr.bf16.mxu0 0
    %482 = vmatpush1.bf16.msra.mxu0 0
    %483 = vmatprep.subr.bf16.mxu0 0
    %484 = vmatpush1.bf16.msra.mxu0 0
    %485 = vmatprep.subr.bf16.mxu0 0
    %486 = vmatpush1.bf16.msra.mxu0 0
    %487 = vmatprep.subr.bf16.mxu0 0
    %488 = vmatpush1.bf16.msra.mxu0 0
    %489 = vmatprep.subr.bf16.mxu0 0
    %490 = vmatpush1.bf16.msra.mxu0 0
    %491 = vmatprep.subr.bf16.mxu0 0
    %492 = vmatpush1.bf16.msra.mxu0 0
    %493 = vmatprep.subr.bf16.mxu0 0
    %494 = vmatpush1.bf16.msra.mxu0 0
    %495 = vmatprep.subr.bf16.mxu0 0
    %496 = vmatpush1.bf16.msra.mxu0 0
    %497 = vmatprep.subr.bf16.mxu0 0
    %498 = vmatpush1.bf16.msra.mxu0 0
    %499 = vmatprep.subr.bf16.mxu0 0
    %500 = vmatpush1.bf16.msra.mxu0 0
    %501 = vmatprep.subr.bf16.mxu0 0
    %502 = vmatpush1.bf16.msra.mxu0 0
    %503 = vmatprep.mubr.bf16.mxu0 0
    %504 = vmatmul.mubr.bf16.gmra.mrb[0].mxu0 %v469
    %v505 = vpop.f32.mrb[0].mxu0
    %v506 = vadd.f32 %v424, %v505
    %v507 = vpop.f32.mrb[0].mxu0
    %v508 = vpop.f32.mrb[0].mxu0
    %v509 = vpop.f32.mrb[0].mxu0
    %510 = vdwg.mxu0
    %v511 = vsel %vm159, %v506, 0.0
    %512 = vadd.xlane.f32.xlu0 %v511
    %v513 = vpop.xlane.xlu0 %512
    %v514 = vrcp.pop 32.0
    %v515 = vmul.f32 %v513, %v514
    %v516 = vsub.f32 %v506, %v515
    %v517 = vmul.f32 %v516, %v516
    %v518 = vsel %vm159, %v517, 0.0
    %519 = vadd.xlane.f32.xlu0 %v518
    %v520 = vpop.xlane.xlu0 %519
    %v521 = vmul.f32 %v520, %v514
    %v522 = vadd.f32 %v521, 1e-05
    %v523 = vrsqrt.pop %v522
    %v524 = vmul.f32 %v516, %v523
    %v525 = vlaneseq
    %v526 = vshrl.u32 %v525, 7
    %v527 = vsub.s32 1, %v526
    %v528 = vrot.slane %v408, %v527
    %v529 = vmul.f32 %v524, %v528
    %v530 = vlaneseq
    %v531 = vshrl.u32 %v530, 7
    %v532 = vsub.s32 2, %v531
    %v533 = vrot.slane %v408, %v532
    %v534 = vadd.f32 %v529, %v533
    %535 = vst.msk [vmem:[#allocation2] sm:$0xff] %vm159, %v534
    // Predicated region
    $region22: #{cross_attention_head.1} parent=1 // pred_check
      _
    $region23: #{cross_attention_head.1} parent=1 // pred_check_branch
      %537 = sbr.rel (0) target = $region25
    $region24: #{cross_attention_head.1} parent=1 // pred_region
      %s539 = ssub.s32 128, 128
      %540 = vsyncadd [#allocation3], %s539
      %s542 = sshll.u32 [#allocation2], 4
      %s543 = int_to_ptr.vmem [resolvable:$true] %s542
      %545 = dma.vmem_to_hbm [thread:$0]  %s543, 128, %s5, [#allocation3]
    $region25: #{cross_attention_head.1} parent=1 // pred_fallthru
      _
    // Predicated region
    $region26: #{cross_attention_head.1} parent=1 // pred_check
      _
    $region27: #{cross_attention_head.1} parent=1 // pred_check_branch
      %547 = sbr.rel (0) target = $region29
    $region28: #{cross_attention_head.1} parent=1 // pred_region
      %548 = dma.done [#allocation3], 128
    $region29: #{cross_attention_head.1} parent=1 // pred_fallthru
      _
    %549 = vsyncpa [#allocation3], 1

</llo_original>
